<compile_context>
chip_gen: v6e
topology: v6e:2x2x1
jax: 0.10.0
libtpu: 0.0.40
codegen_flags: <defaults>
</compile_context>

<pallas_src>
import functools
import math

import numpy as np
import jax
import jax.numpy as jnp
from jax.experimental import pallas as pl
from jax.experimental.pallas import tpu as pltpu

# ---------------------------------------------------------------------------
# module hyper-parameters (match the PyTorch defaults)
# ---------------------------------------------------------------------------
INPUT_MULT, INPUT_L = 3, 3
HIDDEN_MULT, HIDDEN_L = 2, 3
OUTPUT_MULT, OUTPUT_L = 3, 3
BN_EPS = 1e-5
NORM_EPS = 1e-12


# ---------------------------------------------------------------------------
# real Clebsch-Gordan coefficients (Racah formula + real-SH basis change)
# ---------------------------------------------------------------------------
def _su2_cg(j1, m1, j2, m2, j3, m3):
    if m3 != m1 + m2:
        return 0.0
    f = lambda x: float(math.factorial(int(round(x))))
    vmin = int(max(-j1 + j2 + m3, -j1 + m1, 0))
    vmax = int(min(j2 + j3 + m1, j3 - j1 + j2, j3 + m3))
    c = math.sqrt(
        (2.0 * j3 + 1.0)
        * f(j3 + j1 - j2) * f(j3 - j1 + j2) * f(j1 + j2 - j3)
        * f(j3 + m3) * f(j3 - m3)
        / (f(j1 + j2 + j3 + 1) * f(j1 - m1) * f(j1 + m1) * f(j2 - m2) * f(j2 + m2))
    )
    s = 0.0
    for v in range(vmin, vmax + 1):
        s += (-1.0) ** (v + j2 + m2) * (
            f(j2 + j3 + m1 - v) * f(j1 - m1 + v)
            / (f(v) * f(j3 - j1 + j2 - v) * f(j3 + m3 - v) * f(v + j1 - j2 - m3))
        )
    return c * s


def _real_to_complex_basis(l):
    q = np.zeros((2 * l + 1, 2 * l + 1), dtype=np.complex128)
    for m in range(-l, 0):
        q[l + m, l + abs(m)] = 1.0 / math.sqrt(2.0)
        q[l + m, l - abs(m)] = -1j / math.sqrt(2.0)
    q[l, l] = 1.0
    for m in range(1, l + 1):
        q[l + m, l + abs(m)] = (-1) ** m / math.sqrt(2.0)
        q[l + m, l - abs(m)] = 1j * (-1) ** m / math.sqrt(2.0)
    return (-1j) ** l * q


def real_clebsch_gordan(l1, l2, l3):
    """Real-basis CG tensor, indexed [m1, m2, M]."""
    c = np.zeros((2 * l1 + 1, 2 * l2 + 1, 2 * l3 + 1), dtype=np.complex128)
    for i, m1 in enumerate(range(-l1, l1 + 1)):
        for j, m2 in enumerate(range(-l2, l2 + 1)):
            for k, m3 in enumerate(range(-l3, l3 + 1)):
                c[i, j, k] = _su2_cg(l1, m1, l2, m2, l3, m3)
    q1, q2, q3 = (_real_to_complex_basis(l) for l in (l1, l2, l3))
    cr = np.einsum("ij,kl,mn,ikn->jlm", q1, q2, np.conj(q3).T, c)
    if np.abs(cr.real).max() >= np.abs(cr.imag).max():
        return np.ascontiguousarray(cr.real).astype(np.float64)
    return np.ascontiguousarray(cr.imag).astype(np.float64)


# ---------------------------------------------------------------------------
# constant / parameter matrices (built once in numpy)
# ---------------------------------------------------------------------------
def _block_linear(in_mult, in_l, out_mult, out_l, rng):
    """RegularLinearProjection as one (Din, Dout) block-diagonal matrix."""
    d_in = in_mult * (in_l + 1) ** 2
    d_out = out_mult * (out_l + 1) ** 2
    w = np.zeros((d_in, d_out), np.float64)
    for l in range(min(in_l, out_l) + 1):
        p = 2 * l + 1
        oi, oo = in_mult * l * l, out_mult * l * l
        wl = rng.standard_normal((out_mult, in_mult)) / math.sqrt(in_mult)
        for co in range(out_mult):
            for ci in range(in_mult):
                for m in range(p):
                    w[oi + ci * p + m, oo + co * p + m] = wl[co, ci]
    return w


def _group_matrix(mult, max_l):
    """0/1 matrix: (x*x) @ G gives, at every slot, the squared L2 norm of its (l, c) field."""
    d = mult * (max_l + 1) ** 2
    g = np.zeros((d, d), np.float64)
    for l in range(max_l + 1):
        p = 2 * l + 1
        off = mult * l * l
        for c in range(mult):
            s = off + c * p
            g[s:s + p, s:s + p] = 1.0
    return g


def _cg_matrices(mult, max_l):
    """RA/RB replicate (m1)/(m2) into the (m1, m2) product space; WCG contracts with CG -> M."""
    d = mult * (max_l + 1) ** 2
    r_total = mult * sum((2 * l + 1) ** 2 for l in range(max_l + 1))
    ra = np.zeros((d, r_total), np.float64)
    rb = np.zeros((d, r_total), np.float64)
    wcg = np.zeros((r_total, d), np.float64)
    off_r = 0
    for l in range(max_l + 1):
        p = 2 * l + 1
        cg = real_clebsch_gordan(l, l, l)
        off_d = mult * l * l
        for c in range(mult):
            for m1 in range(p):
                for m2 in range(p):
                    col = off_r + c * p * p + m1 * p + m2
                    ra[off_d + c * p + m1, col] = 1.0
                    rb[off_d + c * p + m2, col] = 1.0
                    for mm in range(p):
                        wcg[col, off_d + c * p + mm] = cg[m1, m2, mm]
        off_r += mult * p * p
    return ra, rb, wcg


def _dft_matrices(n):
    """Exact float64 half-spectrum (rfft) DFT / weighted-IDFT matrices.
    Frequency axis is padded (zero rows / zero weights) up to a multiple of 8 so all
    in-kernel sublane slices stay aligned; padding is exact (contributes nothing)."""
    nf_true = n // 2 + 1
    nf = -(-nf_true // 8) * 8
    f = np.arange(nf)[:, None].astype(np.float64)
    t = np.arange(n)[None, :].astype(np.float64)
    ang = 2.0 * np.pi * f * t / n
    valid = (np.arange(nf)[:, None] < nf_true).astype(np.float64)
    dft_cos = np.cos(ang) * valid
    dft_sin = np.sin(ang) * valid
    w = np.where((np.arange(nf) == 0) | (2 * np.arange(nf) == n), 1.0, 2.0)
    w = w * (np.arange(nf) < nf_true).astype(np.float64)
    idft_cos = np.cos(ang).T * w[None, :]
    idft_sin = np.sin(ang).T * w[None, :]
    return dft_cos, dft_sin, idft_cos, idft_sin


def build_params(seq, seed=0):
    rng = np.random.default_rng(seed)
    d_in = INPUT_MULT * (INPUT_L + 1) ** 2
    d_h = HIDDEN_MULT * (HIDDEN_L + 1) ** 2
    wqkv = np.concatenate(
        [_block_linear(INPUT_MULT, INPUT_L, HIDDEN_MULT, HIDDEN_L, rng) for _ in range(3)],
        axis=1)
    wout = _block_linear(HIDDEN_MULT, HIDDEN_L, OUTPUT_MULT, OUTPUT_L, rng)
    gin = _group_matrix(INPUT_MULT, INPUT_L)
    gh = _group_matrix(HIDDEN_MULT, HIDDEN_L)
    gh3 = np.zeros((3 * d_h, 3 * d_h), np.float64)      # lane-dense l2norm of the qkv slab
    for blk in range(3):
        gh3[blk * d_h:(blk + 1) * d_h, blk * d_h:(blk + 1) * d_h] = gh
    ra, rb, wcg = _cg_matrices(HIDDEN_MULT, HIDDEN_L)
    dc, dsn, ic, isn = _dft_matrices(seq)
    bf16 = jnp.bfloat16
    return dict(
        gamma=jnp.ones((1, d_in), jnp.float32),
        gin=jnp.asarray(gin, bf16),
        wqkv=jnp.asarray(wqkv, bf16),
        gh3=jnp.asarray(gh3, bf16),
        dft_cos=jnp.asarray(dc, bf16), dft_sin=jnp.asarray(dsn, bf16),
        idft_cos=jnp.asarray(ic, bf16), idft_sin=jnp.asarray(isn, bf16),
        ra=jnp.asarray(ra, bf16), rb=jnp.asarray(rb, bf16),
        wcg=jnp.asarray(wcg, bf16), wout=jnp.asarray(wout, bf16),
    )


# ---------------------------------------------------------------------------
# Pallas kernels
# ---------------------------------------------------------------------------
def _bf16_dot(a, b):
    return jnp.dot(a.astype(jnp.bfloat16), b.astype(jnp.bfloat16),
                   preferred_element_type=jnp.float32)


def _bn_stats_kernel(x_ref, gin_ref, ms_ref, *, inv_rows):
    """Pre-pass: mean over all (b, n) rows of the per-field squared norms.
    Output block index is constant across the grid -> resident accumulator (init/finalize
    with pl.when); grid axis is 'arbitrary'."""
    @pl.when(pl.program_id(0) == 0)
    def _init():
        ms_ref[...] = jnp.zeros_like(ms_ref)

    x = x_ref[...].reshape(x_ref.shape[1], x_ref.shape[2])
    sq = _bf16_dot(x * x, gin_ref[...])
    ms_ref[...] += jnp.sum(sq, axis=0, keepdims=True)

    @pl.when(pl.program_id(0) == pl.num_programs(0) - 1)
    def _fin():
        ms_ref[...] *= inv_rows


def _se3_main_kernel(x_ref, ms_ref, gamma_ref, wqkv_ref, gh3_ref,
                     dc_ref, ds_ref, idc_ref, ids_ref,
                     ra_ref, rb_ref, wcg_ref, wout_ref, out_ref):
    """One grid step = one batch element (grid axis 'parallel' -> v7x megacore)."""
    n, d_in = x_ref.shape[1], x_ref.shape[2]
    d_h = ra_ref.shape[0]
    nf = dc_ref.shape[0]
    d_out = wout_ref.shape[1]
    dot = _bf16_dot

    x = x_ref[...].reshape(n, d_in)

    # RegularBatchNorm (eval-mode, global stats from the pre-pass, unit affine scale)
    x = x * gamma_ref[...] * jax.lax.rsqrt(ms_ref[...] + BN_EPS)

    # fused q/k/v RegularLinearProjection -> lane-dense (N, 3*d_h) slab
    qkv = dot(x, wqkv_ref[...])
    # normalize_features: L2-normalize every (degree, channel) field over m (block-diag gh3)
    s = dot(qkv * qkv, gh3_ref[...])
    qkv = qkv * jax.lax.rsqrt(s + NORM_EPS)
    qk = qkv[:, :2 * d_h]                  # [q | k]  (N, 64)
    v = qkv[:, 2 * d_h:]                   # (N, 32)

    # equiFFT: half-spectrum DFT over the sequence axis, q and k in one matmul each.
    fr = dot(dc_ref[...], qk)              # (NF, 64)
    fi = -dot(ds_ref[...], qk)
    freq = jnp.concatenate([fr, fi], axis=0)          # [Fr ; Fi]  (2*NF, 64)

    # replicate into the (m1, m2) product space; stack along M to amortize MXU pushes
    a_rep = dot(freq[:, :d_h], ra_ref[...])                          # [qr;qi] @ RA
    b_rep = dot(jnp.concatenate([freq[:, d_h:], v], axis=0), rb_ref[...])  # [kr;ki;v] @ RB
    qrr, qir = a_rep[:nf], a_rep[nf:]
    krr, kir, v_rep = b_rep[:nf], b_rep[nf:2 * nf], b_rep[2 * nf:]

    # frequency-domain complex Clebsch-Gordan product, then contract with CG -> M
    pr = qrr * krr - qir * kir
    pi = qrr * kir + qir * krr
    y = dot(jnp.concatenate([pr, pi], axis=0), wcg_ref[...])         # [Yr ; Yi]  (2*NF, 32)

    # weighted half-spectrum inverse DFT (real output)
    attn = (dot(idc_ref[...], y[:nf]) - dot(ids_ref[...], y[nf:])) * (1.0 / n)

    # ClebschGordonProjection with v (time domain), then output RegularLinearProjection
    h = dot(dot(attn, ra_ref[...]) * v_rep, wcg_ref[...])
    out = dot(h, wout_ref[...])
    out_ref[...] = out.reshape(1, n, d_out)


def se3_hyper_hyena(x, params, *, vmem_limit_bytes=32 * 1024 * 1024):
    b, n, d_in = x.shape
    d_out = params["wout"].shape[1]

    def fullspec(a):
        return pl.BlockSpec(a.shape, lambda i, _nd=a.ndim: (0,) * _nd)

    # pass 1: global BatchNorm statistics (accumulated across the batch grid axis)
    mean_sq = pl.pallas_call(
        functools.partial(_bn_stats_kernel, inv_rows=1.0 / (b * n)),
        out_shape=jax.ShapeDtypeStruct((1, d_in), jnp.float32),
        grid=(b,),
        in_specs=[pl.BlockSpec((1, n, d_in), lambda i: (i, 0, 0)),
                  fullspec(params["gin"])],
        out_specs=pl.BlockSpec((1, d_in), lambda i: (0, 0)),
        compiler_params=pltpu.CompilerParams(
            dimension_semantics=("arbitrary",), vmem_limit_bytes=vmem_limit_bytes),
    )(x, params["gin"])

    # pass 2: main fused forward, one grid step per batch element
    weight_names = ("gamma", "wqkv", "gh3", "dft_cos", "dft_sin",
                    "idft_cos", "idft_sin", "ra", "rb", "wcg", "wout")
    weights = [params[k] for k in weight_names]
    return pl.pallas_call(
        _se3_main_kernel,
        out_shape=jax.ShapeDtypeStruct((b, n, d_out), jnp.float32),
        grid=(b,),
        in_specs=[pl.BlockSpec((1, n, d_in), lambda i: (i, 0, 0)),
                  pl.BlockSpec((1, d_in), lambda i: (0, 0))]
                 + [fullspec(w) for w in weights],
        out_specs=pl.BlockSpec((1, n, d_out), lambda i: (i, 0, 0)),
        compiler_params=pltpu.CompilerParams(
            dimension_semantics=("parallel",), vmem_limit_bytes=vmem_limit_bytes),
    )(x, mean_sq, *weights)


# ---------------------------------------------------------------------------
# references
# ---------------------------------------------------------------------------
def numpy_reference(x, p, *, half):
    """float64 numpy model.  half=False: original full-spectrum DFT math (module semantics);
    half=True: the kernel's rfft half-spectrum formulation (exact f64 matrices)."""
    b, n, d_in = x.shape
    d_h = p["ra"].shape[0]
    ra, rb, wcg = p["ra"], p["rb"], p["wcg"]
    x2 = x.reshape(b * n, d_in)
    sq = (x2 * x2) @ p["gin"]
    x2 = x2 * p["gamma"] / np.sqrt(sq.mean(axis=0, keepdims=True) + BN_EPS)
    qkv = x2 @ p["wqkv"]
    qkv = qkv / np.sqrt((qkv * qkv) @ p["gh3"] + NORM_EPS)
    q = qkv[:, :d_h].reshape(b, n, d_h)
    k = qkv[:, d_h:2 * d_h].reshape(b, n, d_h)
    v = qkv[:, 2 * d_h:].reshape(b, n, d_h)
    if half:
        c, s, ci, si = _dft_matrices(n)
    else:
        ang = 2.0 * np.pi * np.outer(np.arange(n), np.arange(n)) / n
        c, s = np.cos(ang), np.sin(ang)
        ci, si = c, s
    f = lambda a, bb: ((a @ ra) * (bb @ rb)) @ wcg
    outs = []
    for i in range(b):
        qr, qi = c @ q[i], -(s @ q[i])
        kr, ki = c @ k[i], -(s @ k[i])
        yr = f(qr, kr) - f(qi, ki)
        yi = f(qr, ki) + f(qi, kr)
        attn = (ci @ yr - si @ yi) / n
        h = ((attn @ ra) * (v[i] @ rb)) @ wcg
        outs.append(h @ p["wout"])
    return np.stack(outs, axis=0)


def jax_reference(x, p):
    """Plain-JAX transcription of the kernel math (same bf16 casts) for an apples-to-apples
    implementation check."""
    b, n, d_in = x.shape
    d_h = p["ra"].shape[0]
    dot = _bf16_dot
    x2 = x.reshape(b * n, d_in)
    sq = dot(x2 * x2, p["gin"])
    x2 = x2 * p["gamma"] * jax.lax.rsqrt(jnp.mean(sq, axis=0, keepdims=True) + BN_EPS)
    xn = x2.reshape(b, n, d_in)
    outs = []
    for i in range(b):
        qkv = dot(xn[i], p["wqkv"])
        qkv = qkv * jax.lax.rsqrt(dot(qkv * qkv, p["gh3"]) + NORM_EPS)
        qk, v = qkv[:, :2 * d_h], qkv[:, 2 * d_h:]
        fr = dot(p["dft_cos"], qk)
        fi = -dot(p["dft_sin"], qk)
        nf = fr.shape[0]
        freq = jnp.concatenate([fr, fi], axis=0)
        a_rep = dot(freq[:, :d_h], p["ra"])
        b_rep = dot(jnp.concatenate([freq[:, d_h:], v], axis=0), p["rb"])
        qrr, qir = a_rep[:nf], a_rep[nf:]
        krr, kir, v_rep = b_rep[:nf], b_rep[nf:2 * nf], b_rep[2 * nf:]
        y = dot(jnp.concatenate([qrr * krr - qir * kir, qrr * kir + qir * krr], axis=0),
                p["wcg"])
        attn = (dot(p["idft_cos"], y[:nf]) - dot(p["idft_sin"], y[nf:])) * (1.0 / n)
        h = dot(dot(attn, p["ra"]) * v_rep, p["wcg"])
        outs.append(dot(h, p["wout"]))
    return jnp.stack(outs, axis=0)


if __name__ == "__main__":
    B, N = 2, 16                                      # N multiple of 8 (sublane-aligned)
    D_IN = INPUT_MULT * (INPUT_L + 1) ** 2            # 48
    D_OUT = OUTPUT_MULT * (OUTPUT_L + 1) ** 2         # 48

    x = jax.random.normal(jax.random.PRNGKey(0), (B, N, D_IN), dtype=jnp.float32)
    params = build_params(N, seed=0)

    y = jax.block_until_ready(se3_hyper_hyena(x, params))
    assert y.shape == (B, N, D_OUT), y.shape
    assert bool(jnp.all(jnp.isfinite(y)))

    # (1) algebra check in float64: the rfft half-spectrum pipeline used by the kernel is
    #     exactly equivalent to the original full-spectrum forward.
    xd = np.asarray(x, np.float64)
    pd = {k: np.asarray(jnp.asarray(v, jnp.float32)).astype(np.float64)
          for k, v in params.items()}
    y_full = numpy_reference(xd, pd, half=False)
    y_half = numpy_reference(xd, pd, half=True)
    assert float(np.max(np.abs(y_full - y_half))) < 1e-6

    # (2) implementation check: Pallas kernel vs a same-precision plain-JAX transcription.
    y_ref = jax.block_until_ready(jax_reference(x, params))
    assert bool(jnp.allclose(y, y_ref, rtol=1e-2, atol=1e-2)), \
        float(jnp.max(jnp.abs(y - y_ref)))

    print("KERNEL_OK")
</pallas_src>

<mosaic_0001>
module attributes {stable_mosaic.version = 11 : i64} {
  func.func @_bn_stats_kernel(%arg0: i32, %arg1: memref<1x16x48xf32, #tpu.memory_space<vmem>>, %arg2: memref<48x48xbf16, #tpu.memory_space<vmem>>, %arg3: memref<1x48xf32, #tpu.memory_space<vmem>>) attributes {dimension_semantics = [#tpu.dimension_semantics<arbitrary>], iteration_bounds = array<i64: 2>, scalar_prefetch = 0 : i64, scratch_operands = 0 : i64, tpu.core_type = #tpu.core_type<tc>, window_params = [{transform_indices = @transform_0, window_bounds = array<i64: 1, 16, 48>}, {pipeline_mode = #tpu.pipeline_mode<synchronous>, transform_indices = @transform_1, window_bounds = array<i64: 48, 48>}, {pipeline_mode = #tpu.pipeline_mode<synchronous>, transform_indices = @transform_2, window_bounds = array<i64: 1, 48>}]} {
    %c0_i32 = arith.constant 0 : i32
    %0 = arith.cmpi eq, %arg0, %c0_i32 : i32
    %1 = arith.extui %0 : i1 to i32
    %c0_i32_0 = arith.constant 0 : i32
    %2 = arith.cmpi ne, %1, %c0_i32_0 : i32
    scf.if %2 {
      %cst_11 = arith.constant 0.000000e+00 : f32
      %17 = vector.broadcast %cst_11 : f32 to vector<1x48xf32>
      %c0_12 = arith.constant 0 : index
      %c0_13 = arith.constant 0 : index
      %18 = vector.load %arg3[%c0_12, %c0_13] : memref<1x48xf32, #tpu.memory_space<vmem>>, vector<1x48xf32>
      tpu.vector_store %arg3[%c0_12, %c0_13], %17 {strides = array<i32>} : memref<1x48xf32, #tpu.memory_space<vmem>>, vector<1x48xf32>,
    } else {
    }
    %c0 = arith.constant 0 : index
    %c0_1 = arith.constant 0 : index
    %c0_2 = arith.constant 0 : index
    %3 = vector.load %arg1[%c0, %c0_1, %c0_2] : memref<1x16x48xf32, #tpu.memory_space<vmem>>, vector<1x16x48xf32>
    %4 = vector.shape_cast %3 : vector<1x16x48xf32> to vector<16x48xf32>
    %5 = arith.mulf %4, %4 : vector<16x48xf32>
    %c0_3 = arith.constant 0 : index
    %c0_4 = arith.constant 0 : index
    %6 = vector.load %arg2[%c0_3, %c0_4] : memref<48x48xbf16, #tpu.memory_space<vmem>>, vector<48x48xbf16>
    %7 = arith.truncf %5 : vector<16x48xf32> to vector<16x48xbf16>
    %cst = arith.constant dense<0.000000e+00> : vector<16x48xf32>
    %8 = tpu.matmul %7, %6, %cst {dimension_numbers = #tpu.dot_dimension_numbers<[1], [0], [0], [1], [0, 0, 1, 1], [], []>} : vector<16x48xbf16>, vector<48x48xbf16>, vector<16x48xf32> -> vector<16x48xf32>
    %c0_5 = arith.constant 0 : index
    %c0_6 = arith.constant 0 : index
    %9 = vector.load %arg3[%c0_5, %c0_6] : memref<1x48xf32, #tpu.memory_space<vmem>>, vector<1x48xf32>
    %cst_7 = arith.constant dense<0.000000e+00> : vector<48xf32>
    %10 = vector.multi_reduction <add>, %8, %cst_7 [0] : vector<16x48xf32> to vector<48xf32>
    %11 = vector.shape_cast %10 : vector<48xf32> to vector<1x48xf32>
    %12 = arith.addf %9, %11 : vector<1x48xf32>
    %c0_8 = arith.constant 0 : index
    %c0_9 = arith.constant 0 : index
    %13 = vector.load %arg3[%c0_8, %c0_9] : memref<1x48xf32, #tpu.memory_space<vmem>>, vector<1x48xf32>
    tpu.vector_store %arg3[%c0_8, %c0_9], %12 {strides = array<i32>} : memref<1x48xf32, #tpu.memory_space<vmem>>, vector<1x48xf32>,
    %c1_i32 = arith.constant 1 : i32
    %14 = arith.cmpi eq, %arg0, %c1_i32 : i32
    %15 = arith.extui %14 : i1 to i32
    %c0_i32_10 = arith.constant 0 : i32
    %16 = arith.cmpi ne, %15, %c0_i32_10 : i32
    scf.if %16 {
      %c0_11 = arith.constant 0 : index
      %c0_12 = arith.constant 0 : index
      %17 = vector.load %arg3[%c0_11, %c0_12] : memref<1x48xf32, #tpu.memory_space<vmem>>, vector<1x48xf32>
      %cst_13 = arith.constant 3.125000e-02 : f32
      %18 = vector.broadcast %cst_13 : f32 to vector<1x48xf32>
      %19 = arith.mulf %17, %18 : vector<1x48xf32>
      %c0_14 = arith.constant 0 : index
      %c0_15 = arith.constant 0 : index
      %20 = vector.load %arg3[%c0_14, %c0_15] : memref<1x48xf32, #tpu.memory_space<vmem>>, vector<1x48xf32>
      tpu.vector_store %arg3[%c0_14, %c0_15], %19 {strides = array<i32>} : memref<1x48xf32, #tpu.memory_space<vmem>>, vector<1x48xf32>,
    } else {
    }
    return
  }
  func.func @transform_0(%arg0: i32) -> (i32, i32, i32) {
    %c0_i32 = arith.constant 0 : i32
    %c0_i32_0 = arith.constant 0 : i32
    %c0_i32_1 = arith.constant 0 : i32
    return %arg0, %c0_i32, %c0_i32_0 : i32, i32, i32
  }
  func.func @transform_1(%arg0: i32) -> (i32, i32) {
    %c0_i32 = arith.constant 0 : i32
    %c0_i32_0 = arith.constant 0 : i32
    %c0_i32_1 = arith.constant 0 : i32
    return %c0_i32, %c0_i32_0 : i32, i32
  }
  func.func @transform_2(%arg0: i32) -> (i32, i32) {
    %c0_i32 = arith.constant 0 : i32
    %c0_i32_0 = arith.constant 0 : i32
    %c0_i32_1 = arith.constant 0 : i32
    return %c0_i32, %c0_i32_0 : i32, i32
  }
}

</mosaic_0001>

<llo_original>
// kernel: tpu_custom_call.1
$region0: #{tpu_custom_call.1}
  #allocation0 [shape = 'u32[]', space=smem, size = 0x4, offset = 0x4, fixed_abs, tag = 'smem constant byte address 0x4 - core index']
  #allocation1 [shape = 'u32[144,128]{1,0:T(1,128)}', space=vmem, size = 0x12000, scoped, tag = 'internal scratch']
  %s0 = inlined_call_operand.hbm [shape: f32[2,16,48], index: 0, kind: input, shape index: {}]
  %s1 = inlined_call_operand.hbm [shape: bf16[48,48], index: 1, kind: input, shape index: {}]
  %s2 = inlined_call_operand.hbm [shape: f32[1,48], index: 2, kind: output, shape index: {}]
  %s3 = sld [smem:[#allocation0]]
  $region57: #{tpu_custom_call.1} parent=0
    _
  %s5 = ssub.s32 1, %s3
  %s6 = scalar_select 0, %s5, %s3
  $region1: #{tpu_custom_call.1} parent=0
    #allocation2 [shape = 'u8[16384]{0}', space=vmem, size = 0x4000, scoped, tag = 'input window, operand 0']
    #allocation3 [shape = 's32[2]{0}', space=sflag, size = 0x8, scoped, tag = 'scoped memory for tpu_custom_call.1']
    #allocation4 [shape = 's32[2]{0}', space=sflag, size = 0x8, scoped, tag = 'scoped memory for tpu_custom_call.1']
    #allocation5 [shape = 'u8[12288]{0}', space=vmem, size = 0x3000, scoped, tag = 'input window, operand 1, single buffered']
    #allocation6 [shape = 's32[1]{0}', space=sflag, size = 0x4, scoped, tag = 'scoped memory for tpu_custom_call.1']
    #allocation7 [shape = 'u8[512]{0}', space=vmem, size = 0x400, scoped, tag = 'output window, operand 0, single buffered']
    %7 = vsyncpa [#allocation3], 0
    %s8 = scalar_lea.sflag [#allocation3], 1
    %9 = vsyncpa %s8, 0
    %10 = vsyncpa [#allocation6], 0
    %11 = vsyncpa [#allocation4], 0
    loop: start=0, step=1, limit=4
    $region2: #{tpu_custom_call.1} parent=1 // loop_pre_header
      _
    $region3: #{tpu_custom_call.1} parent=1 // loop_header
      %s13 = sphi 0, %s17
      %p14 = scmp.ge.s32.totalorder %s13, 4
      %s23 = sphi 0, %s25
      %s26 = sphi 0, %s23
      %s27 = sphi 0, %s26
      %s43 = sphi 0, %s27
      %s47 = sphi 0, %s47
      %s49 = sphi 0, %s47
      %s50 = sphi 0, %s49
      %s64 = sphi 0, %s50
      %s68 = sphi 0, %s68
      %s70 = sphi 0, %s68
      %s71 = sphi 0, %s70
      %s85 = sphi 0, %s71
    $region4: #{tpu_custom_call.1} parent=1 // loop_header_branch
      %16 = sbr.rel (%p14) target = $region8
    $region5: #{tpu_custom_call.1} parent=1 // loop_body
      %s18 = ssub.s32 %s13, 1
      %s19 = ssub.s32 %s13, 2
      %s20 = sadd.s32 %s13, 1
      %s21 = ssub.s32 %s13, %s20
      %p22 = scmp.eq.s32.totalorder %s21, 0
      %s24 = sadd.s32 %s23, 1
      %s25 = scalar_select %p22, %s23, %s24
      %p28 = pneg %p22
      %p29 = scmp.eq.s32.totalorder %s13, 1
      %p30 = por %p28, %p29
      %p31 = scmp.ne.s32.totalorder %s23, %s26
      %p32 = scmp.eq.s32.totalorder %s13, 0
      %p33 = por %p31, %p32
      %p34 = scmp.ne.s32.totalorder %s23, %s26
      %p35 = scmp.eq.s32.totalorder %s18, 1
      %p36 = por %p34, %p35
      %p37 = scmp.ne.s32.totalorder %s26, %s27
      %p38 = scmp.eq.s32.totalorder %s18, 0
      %p39 = por %p37, %p38
      %p40 = scmp.ne.s32.totalorder %s26, %s27
      %p41 = scmp.eq.s32.totalorder %s19, 1
      %p42 = por %p40, %p41
      %p44 = scmp.ne.s32.totalorder %s27, %s43
      %p45 = scmp.eq.s32.totalorder %s19, 0
      %p46 = por %p44, %p45
      %s48 = sadd.s32 %s47, 1
      %p51 = scmp.eq.s32.totalorder %s13, 1
      %p52 = scmp.ne.s32.totalorder %s47, %s49
      %p53 = scmp.eq.s32.totalorder %s13, 0
      %p54 = por %p52, %p53
      %p55 = scmp.ne.s32.totalorder %s47, %s49
      %p56 = scmp.eq.s32.totalorder %s18, 1
      %p57 = por %p55, %p56
      %p58 = scmp.ne.s32.totalorder %s49, %s50
      %p59 = scmp.eq.s32.totalorder %s18, 0
      %p60 = por %p58, %p59
      %p61 = scmp.ne.s32.totalorder %s49, %s50
      %p62 = scmp.eq.s32.totalorder %s19, 1
      %p63 = por %p61, %p62
      %p65 = scmp.ne.s32.totalorder %s50, %s64
      %p66 = scmp.eq.s32.totalorder %s19, 0
      %p67 = por %p65, %p66
      %s69 = sadd.s32 %s68, 1
      %p72 = scmp.eq.s32.totalorder %s13, 1
      %p73 = scmp.ne.s32.totalorder %s68, %s70
      %p74 = scmp.eq.s32.totalorder %s13, 0
      %p75 = por %p73, %p74
      %p76 = scmp.ne.s32.totalorder %s68, %s70
      %p77 = scmp.eq.s32.totalorder %s18, 1
      %p78 = por %p76, %p77
      %p79 = scmp.ne.s32.totalorder %s70, %s71
      %p80 = scmp.eq.s32.totalorder %s18, 0
      %p81 = por %p79, %p80
      %p82 = scmp.ne.s32.totalorder %s70, %s71
      %p83 = scmp.eq.s32.totalorder %s19, 1
      %p84 = por %p82, %p83
      %p86 = scmp.ne.s32.totalorder %s71, %s85
      %p87 = scmp.eq.s32.totalorder %s19, 0
      %p88 = por %p86, %p87
      %p89 = scmp.le.s32.totalorder 1, %s13
      %p90 = scmp.lt.s32.totalorder %s13, 3
      %p91 = pnand %p89, %p90
      %p92 = pneg %p91
      // Predicated region
      $region9: #{tpu_custom_call.1} parent=5 // pred_check
        _
      $region10: #{tpu_custom_call.1} parent=5 // pred_check_branch
        %94 = sbr.rel (%p91) target = $region12
      $region11: #{tpu_custom_call.1} parent=5 // pred_region
        %s95 = ssub.s32 %s13, 1
        // Predicated region
        $region13: #{tpu_custom_call.1} parent=11 // pred_check
          %p96 = pneg %p60
        $region14: #{tpu_custom_call.1} parent=11 // pred_check_branch
          %98 = sbr.rel (%p96) target = $region16
        $region15: #{tpu_custom_call.1} parent=11 // pred_region
          %s100 = ssub.s32 384, 384
          %101 = vsyncadd [#allocation6], %s100
          %s102 = sshll.u32 [#allocation5], 4
          %s103 = int_to_ptr.vmem [resolvable:$true] %s102
          %108 = dma.hbm_to_vmem [thread:$0]  %s1, 384, %s103, [#allocation6], 64, 64, 4
        $region16: #{tpu_custom_call.1} parent=11 // pred_fallthru
          _
      $region12: #{tpu_custom_call.1} parent=5 // pred_fallthru
        _
      %p109 = scmp.lt.s32.totalorder %s13, 2
      // Predicated region
      $region17: #{tpu_custom_call.1} parent=5 // pred_check
        %p110 = pneg %p109
      $region18: #{tpu_custom_call.1} parent=5 // pred_check_branch
        %112 = sbr.rel (%p110) target = $region20
      $region19: #{tpu_custom_call.1} parent=5 // pred_region
        // Predicated region
        $region21: #{tpu_custom_call.1} parent=19 // pred_check
          %p113 = pneg %p33
        $region22: #{tpu_custom_call.1} parent=19 // pred_check_branch
          %115 = sbr.rel (%p113) target = $region24
        $region23: #{tpu_custom_call.1} parent=19 // pred_region
          %s116 = sand.u32 %s23, 1
          %s117 = scalar_lea.sflag [#allocation3], %s116
          %s118 = sand.u32 %s23, 1
          %s119 = smul.addr %s118, 16
          %s120 = scalar_lea.vmem [#allocation2], %s119
          %s122 = ssub.s32 256, 256
          %123 = vsyncadd %s117, %s122
          %s124 = smul.addr %s13, 2
          %s125 = smul.addr %s124, 128
          %s126 = scalar_lea.hbm %s0, %s125
          %s127 = sshll.u32 %s120, 4
          %s128 = int_to_ptr.vmem [resolvable:$true] %s127
          %133 = dma.hbm_to_vmem [thread:$0]  %s126, 256, %s128, %s117, 128, 128, 8
        $region24: #{tpu_custom_call.1} parent=19 // pred_fallthru
          _
      $region20: #{tpu_custom_call.1} parent=5 // pred_fallthru
        _
      %p134 = scmp.le.s32.totalorder 1, %s13
      %p135 = scmp.lt.s32.totalorder %s13, 3
      %p136 = pnand %p134, %p135
      %p137 = pneg %p136
      // Predicated region
      $region25: #{tpu_custom_call.1} parent=5 // pred_check
        _
      $region26: #{tpu_custom_call.1} parent=5 // pred_check_branch
        %139 = sbr.rel (%p136) target = $region28
      $region27: #{tpu_custom_call.1} parent=5 // pred_region
        %s140 = ssub.s32 %s13, 1
        %s141 = sand.u32 %s26, 1
        %s142 = scalar_lea.sflag [#allocation3], %s141
        %s143 = sand.u32 %s26, 1
        %s144 = smul.addr %s143, 16
        %s145 = scalar_lea.vmem [#allocation2], %s144
        // Predicated region
        $region29: #{tpu_custom_call.1} parent=27 // pred_check
          %p146 = pneg %p39
        $region30: #{tpu_custom_call.1} parent=27 // pred_check_branch
          %148 = sbr.rel (%p146) target = $region32
        $region31: #{tpu_custom_call.1} parent=27 // pred_region
          %149 = dma.done %s142, 256
        $region32: #{tpu_custom_call.1} parent=27 // pred_fallthru
          _
        // Predicated region
        $region33: #{tpu_custom_call.1} parent=27 // pred_check
          %p150 = pneg %p60
        $region34: #{tpu_custom_call.1} parent=27 // pred_check_branch
          %152 = sbr.rel (%p150) target = $region36
        $region35: #{tpu_custom_call.1} parent=27 // pred_region
          %153 = dma.done [#allocation6], 384
        $region36: #{tpu_custom_call.1} parent=27 // pred_fallthru
          _
        %s154 = sand.u32 %s26, 1
        %s155 = scalar_lea.sflag [#allocation3], %s154
        %s156 = sand.u32 %s26, 1
        %s157 = smul.addr %s156, 16
        %s158 = scalar_lea.vmem [#allocation2], %s157
        %p159 = pneg %p39
        %p160 = pneg %p36
        %p161 = pneg %p60
        %p162 = pneg %p57
        %p163 = pneg %p81
        %p164 = pneg %p78
        %p166 = scmp.eq.s32.totalorder %s18, 0
        // Predicated region
        $region37: #{tpu_custom_call.1} parent=27 // pred_check
          %p167 = pneg %p166
        $region38: #{tpu_custom_call.1} parent=27 // pred_check_branch
          %169 = sbr.rel (%p167) target = $region40
        $region39: #{tpu_custom_call.1} parent=27 // pred_region
          %vm170 = vcmask 385024
          %171 = vst.msk [vmem:[#allocation7] sm:$0x1] %vm170, 0.0
        $region40: #{tpu_custom_call.1} parent=27 // pred_fallthru
          _
        %v172 = vld [vmem:[%s145] sm:$0xff]
        %v173 = vld [vmem:[%s145 + $0x8] sm:$0xff]
        %v174 = vmul.f32 %v172, %v172
        %v175 = vmul.f32 %v173, %v173
        %v176 = vld [vmem:[#allocation5] sm:$0xf]
        %v177 = vld [vmem:[#allocation5 + $0x4] sm:$0xf]
        %v178 = vld [vmem:[#allocation5 + $0x8] sm:$0xf]
        %v179 = vld [vmem:[#allocation5 + $0xc] sm:$0xf]
        %v180 = vld [vmem:[#allocation5 + $0x10] sm:$0xf]
        %v181 = vld [vmem:[#allocation5 + $0x14] sm:$0xf]
        %v182 = vpack.c.bf16 %v175, %v174
        %v189 = vunpack.c.l.b16 %v176
        %v190 = vunpack.c.l.b16 %v177
        %v191 = vunpack.c.l.b16 %v178
        %v192 = vunpack.c.l.b16 %v179
        %v193 = vunpack.c.l.b16 %v180
        %v194 = vunpack.c.l.b16 %v181
        %v195 = vpack.c.b16 %v190, %v189
        %v196 = vpack.c.b16 %v192, %v191
        %v197 = vpack.c.b16 %v194, %v193
        %vm201 = vcmask 392192
        %v203 = vsel %vm201, %v182, 0
        %205 = vmatprep.subr.bf16.mxu0 0
        %206 = vmatpush1.bf16.msra.mxu0 0
        %207 = vmatprep.subr.bf16.mxu0 0
        %208 = vmatpush1.bf16.msra.mxu0 0
        %209 = vmatprep.subr.bf16.mxu0 0
        %210 = vmatpush1.bf16.msra.mxu0 0
        %211 = vmatprep.subr.bf16.mxu0 0
        %212 = vmatpush1.bf16.msra.mxu0 0
        %213 = vmatprep.subr.bf16.mxu0 0
        %214 = vmatpush1.bf16.msra.mxu0 0
        %215 = vmatprep.subr.bf16.mxu0 0
        %216 = vmatpush1.bf16.msra.mxu0 %v197
        %217 = vmatprep.subr.bf16.mxu0 0
        %218 = vmatpush1.bf16.msra.mxu0 %v196
        %219 = vmatprep.subr.bf16.mxu0 0
        %220 = vmatpush1.bf16.msra.mxu0 %v195
        %221 = vmatprep.subr.bf16.mxu0 0
        %222 = vmatpush2.bf16.msra.mxu0 0
        %223 = vmatprep.subr.bf16.mxu0 0
        %224 = vmatpush2.bf16.msra.mxu0 0
        %225 = vmatprep.subr.bf16.mxu0 0
        %226 = vmatpush2.bf16.msra.mxu0 0
        %227 = vmatprep.subr.bf16.mxu0 0
        %228 = vmatpush2.bf16.msra.mxu0 0
        %229 = vmatprep.subr.bf16.mxu0 0
        %230 = vmatpush2.bf16.msra.mxu0 0
        %231 = vmatprep.subr.bf16.mxu0 0
        %232 = vmatpush2.bf16.msra.mxu0 0
        %233 = vmatprep.subr.bf16.mxu0 0
        %234 = vmatpush2.bf16.msra.mxu0 0
        %235 = vmatprep.subr.bf16.mxu0 0
        %236 = vmatpush2.bf16.msra.mxu0 0
        %237 = vmatprep.mubr.bf16.mxu0 0
        %238 = vmatmul.mubr.bf16.gmra.mxu0 %v203
        %v239 = vpop.f32.mrf.mxu0
        %v240 = vadd.f32 0.0, %v239
        %v241 = vpop.f32.mrf.mxu0
        %v242 = vpop.f32.mrf.mxu0
        %v243 = vadd.f32 0.0, %v242
        %v244 = vpop.f32.mrf.mxu0
        %245 = vdwg.mxu0
        %v246 = vld [vmem:[#allocation7] sm:$0x1]
        %v247 = vsel %vm201, %v240, 0.0
        %v248 = vsel %vm201, %v243, 0.0
        %v249 = vadd.f32 %v247, %v248
        %v250 = vrot.slane %v249, 4
        %v251 = vadd.f32 %v249, %v250
        %v252 = vrot.slane %v251, 2
        %v253 = vadd.f32 %v251, %v252
        %v254 = vrot.slane %v253, 1
        %v255 = vadd.f32 %v253, %v254
        %v256 = vadd.f32 %v246, %v255
        %vm257 = vcmask 385024
        %258 = vst.msk [vmem:[#allocation7] sm:$0x1] %vm257, %v256
        %p259 = scmp.eq.s32.totalorder %s18, 1
        // Predicated region
        $region41: #{tpu_custom_call.1} parent=27 // pred_check
          %p260 = pneg %p259
        $region42: #{tpu_custom_call.1} parent=27 // pred_check_branch
          %262 = sbr.rel (%p260) target = $region44
        $region43: #{tpu_custom_call.1} parent=27 // pred_region
          %v263 = vld [vmem:[#allocation7] sm:$0x1]
          %v264 = vmul.f32 %v263, 0.03125
          %265 = vst.msk [vmem:[#allocation7] sm:$0x1] %vm257, %v264
        $region44: #{tpu_custom_call.1} parent=27 // pred_fallthru
          _
        // Predicated region
        $region45: #{tpu_custom_call.1} parent=27 // pred_check
          %p266 = pneg %p78
        $region46: #{tpu_custom_call.1} parent=27 // pred_check_branch
          %268 = sbr.rel (%p266) target = $region48
        $region47: #{tpu_custom_call.1} parent=27 // pred_region
          %s270 = ssub.s32 16, 16
          %271 = vsyncadd [#allocation4], %s270
          %s273 = sshll.u32 [#allocation7], 4
          %s274 = int_to_ptr.vmem [resolvable:$true] %s273
          %276 = dma.vmem_to_hbm [thread:$0]  %s274, 16, %s2, [#allocation4]
        $region48: #{tpu_custom_call.1} parent=27 // pred_fallthru
          _
        // Predicated region
        $region49: #{tpu_custom_call.1} parent=27 // pred_check
          %p277 = pneg %p78
        $region50: #{tpu_custom_call.1} parent=27 // pred_check_branch
          %279 = sbr.rel (%p277) target = $region52
        $region51: #{tpu_custom_call.1} parent=27 // pred_region
          %280 = dma.done [#allocation4], 16
        $region52: #{tpu_custom_call.1} parent=27 // pred_fallthru
          _
      $region28: #{tpu_custom_call.1} parent=5 // pred_fallthru
        _
      %p281 = scmp.le.s32.totalorder 2, %s13
      // Predicated region
      $region53: #{tpu_custom_call.1} parent=5 // pred_check
        %p282 = pneg %p281
      $region54: #{tpu_custom_call.1} parent=5 // pred_check_branch
        %284 = sbr.rel (%p282) target = $region56
      $region55: #{tpu_custom_call.1} parent=5 // pred_region
        %s285 = ssub.s32 %s13, 2
      $region56: #{tpu_custom_call.1} parent=5 // pred_fallthru
        _
    $region6: #{tpu_custom_call.1} parent=1 // loop_footer
      %s17 = sadd.s32 1, %s13
    $region7: #{tpu_custom_call.1} parent=1 // loop_footer_branch
      %12 = sbr.rel target = $region3
    $region8: #{tpu_custom_call.1} parent=1 // loop_exit
      _
    %286 = vsyncpa [#allocation3], 1
    %s287 = scalar_lea.sflag [#allocation3], 1
    %288 = vsyncpa %s287, 1
    %289 = vsyncpa [#allocation6], 1
    %290 = vsyncpa [#allocation4], 1
    %s291 = scalar_lea.sflag [#allocation4], 1
    %292 = vsyncpa %s291, 1

</llo_original>
